<compile_context>
chip_gen: v7x
topology: tpu7x:2x2x1
jax: 0.10.0
libtpu: 0.0.40
codegen_flags: <defaults>
</compile_context>

<pallas_src>
import functools

import jax
import jax.numpy as jnp
import numpy as np
from jax import lax
from jax.experimental import pallas as pl
from jax.experimental.pallas import tpu as pltpu

_SQRT_HALF = 0.7071067811865476


def _gelu_exact(x):
    # nn.GELU() default: 0.5 * x * (1 + erf(x / sqrt(2)))
    return 0.5 * x * (1.0 + lax.erf(x * jnp.float32(_SQRT_HALF)))


def _round_up(n, m):
    return ((n + m - 1) // m) * m


def _cdiv(a, b):
    return -(-a // b)


def _vmem_capacity_bytes():
    """Per-TensorCore VMEM capacity; conservative 64 MiB fallback (v7x)."""
    try:
        return int(pltpu.get_tpu_info().vmem_capacity_bytes)
    except Exception:
        return 64 * 1024 * 1024


def _spec(shape, index_map, *, resident=False):
    """BlockSpec helper; resident (constant index_map) blocks are single-buffered."""
    if resident:
        try:
            return pl.BlockSpec(shape, index_map, pipeline_mode=pl.Buffered(1))
        except Exception:
            # Older JAX without pipeline_mode: fall back to default buffering.
            return pl.BlockSpec(shape, index_map)
    return pl.BlockSpec(shape, index_map)


def _mlp_kernel(x_ref, w1_ref, b1_ref, w2_ref, b2_ref, o_ref, acc_ref, *,
                chunk: int, n_inner: int, k_steps: int,
                activated_out: bool, residual: bool, mxu_dtype):
    """One (tile_m x out_f) output tile; hidden streamed in chunks of `chunk`."""

    def matmul_chunk(off):
        xv = x_ref[...]
        w1c = w1_ref[:, pl.ds(off, chunk)]
        w2c = w2_ref[pl.ds(off, chunk), :]
        if mxu_dtype is not None:
            xv = xv.astype(mxu_dtype)
            w1c = w1c.astype(mxu_dtype)
            w2c = w2c.astype(mxu_dtype)
        h = jnp.dot(xv, w1c, preferred_element_type=jnp.float32)
        h = _gelu_exact(h + b1_ref[:, pl.ds(off, chunk)].astype(jnp.float32))
        return jnp.dot(h.astype(w2c.dtype), w2c,
                       preferred_element_type=jnp.float32)

    def epilogue(y):
        y = y + b2_ref[...].astype(jnp.float32)
        if activated_out:
            y = _gelu_exact(y)
        if residual:
            # Re-read x from VMEM (cheap vld) instead of keeping an f32 copy
            # live across the whole hidden loop.
            y = y + x_ref[...].astype(jnp.float32)
        o_ref[...] = y.astype(o_ref.dtype)

    if k_steps == 1:
        # Weight-resident path: W1/W2 fully in VMEM; hidden streamed in-kernel.
        if n_inner == 1:
            epilogue(matmul_chunk(0))
        else:
            acc_ref[...] = jnp.zeros_like(acc_ref)

            def body(c, carry):
                off = pl.multiple_of(c * chunk, chunk)
                acc_ref[...] += matmul_chunk(off)
                return carry

            lax.fori_loop(0, n_inner, body, 0)
            epilogue(acc_ref[...])
    else:
        # Streamed-weight path: one hidden chunk per grid step (K axis last),
        # f32 accumulator resident across K.
        k_id = pl.program_id(1)

        @pl.when(k_id == 0)
        def _init():
            acc_ref[...] = jnp.zeros_like(acc_ref)

        acc_ref[...] += matmul_chunk(0)

        @pl.when(k_id == k_steps - 1)
        def _finalize():
            epilogue(acc_ref[...])


def mlp_pallas(x, w1, b1, w2, b2, *, activated_out=True, feature_dim=-1,
               residual=False, tile_m=512, hidden_chunk=512, mxu_dtype=None):
    """x: (B, S, F) if feature_dim == -1, (B, F, S) if feature_dim == 1.

    w1: (in_features, hidden)   b1: (hidden,)
    w2: (hidden, out_features)  b2: (out_features,)
    mxu_dtype: optional dtype (e.g. jnp.bfloat16) to run the matmuls on the
      bf16-native MXU with f32 accumulation; None keeps the input dtype.
    """
    assert feature_dim in (-1, 1)
    in_f, hidden = w1.shape
    hidden2, out_f = w2.shape
    assert hidden == hidden2
    assert b1.shape == (hidden,) and b2.shape == (out_f,)
    if residual:
        assert in_f == out_f, "residual requires in_features == out_features"

    if feature_dim == 1:
        # TODO(synk): fold the (B, F, S) layout into the BlockSpec / an
        # in-kernel pltpu.einshape instead of a wrapper transpose (one full HBM
        # read+write of the activation in each direction).
        x_feat_last = jnp.transpose(x, (0, 2, 1))      # (B, S, F)
    else:
        x_feat_last = x

    lead_shape = x_feat_last.shape[:-1]
    M = int(np.prod(lead_shape))
    x2d = x_feat_last.reshape(M, in_f)

    x_dtype = x.dtype
    w_dtype = w1.dtype
    xb = jnp.dtype(x_dtype).itemsize
    wb = jnp.dtype(w_dtype).itemsize
    mm_b = jnp.dtype(mxu_dtype).itemsize if mxu_dtype is not None else wb
    sublane = max(8, 32 // max(1, xb))                 # 8 for f32, 16 for bf16

    # ---- hidden chunking (weights-only padding; x / out are never padded) ---
    hidden_chunk = max(128, (int(hidden_chunk) // 128) * 128)
    chunk = hidden if hidden <= hidden_chunk else hidden_chunk
    hid_p = _round_up(hidden, chunk)

    # ---- generation-aware VMEM budget ---------------------------------------
    capacity = _vmem_capacity_bytes()
    budget = int(capacity * 0.75) - (2 << 20)          # headroom for Mosaic scratch

    def per_row_bytes(ck):
        # x tile (2 bufs) + out tile (2 bufs) + f32 accumulator + f32 hidden
        # chunk + its matmul-dtype recast + f32 epilogue temp.
        return (2 * in_f * xb + 2 * out_f * xb + 4 * out_f
                + ck * (4 + mm_b) + 4 * out_f)

    # Path A: both weight matrices resident in VMEM (single-buffered), hidden
    # streamed in-kernel.  Path B: hidden streamed through a K grid axis
    # (weight chunks double-buffered HBM->VMEM).
    resident_weight_bytes = (in_f * hid_p + hid_p * out_f + hid_p + out_f) * wb
    weights_resident = (resident_weight_bytes + per_row_bytes(chunk) * sublane
                        <= budget)

    if weights_resident:
        fixed_bytes = resident_weight_bytes
        k_steps = 1
        n_inner = hid_p // chunk
    else:
        # Shrink the streamed hidden chunk until its double-buffered blocks fit.
        while True:
            fixed_bytes = (2 * (in_f * chunk + chunk * out_f + chunk)
                           + out_f) * wb
            if (fixed_bytes + per_row_bytes(chunk) * sublane <= budget
                    or chunk <= 128):
                break
            chunk = max(128, (chunk // 2 // 128) * 128)
        hid_p = _round_up(hidden, chunk)
        k_steps = hid_p // chunk
        n_inner = 1
        # TODO(synk): if in_f / out_f alone are so large that even a 128-wide
        # hidden chunk does not fit VMEM, an out_f (N) grid axis is also needed.

    # ---- weight padding along hidden only (one-time, tiny) ------------------
    # Zero padding is semantics-preserving: padded hidden units get bias 0 ->
    # GELU(0) = 0, and the matching W2 rows are zero.
    if hid_p != hidden:
        w1p = jnp.pad(w1, ((0, 0), (0, hid_p - hidden)))
        b1p = jnp.pad(b1, (0, hid_p - hidden))
        w2p = jnp.pad(w2, ((0, hid_p - hidden), (0, 0)))
    else:
        w1p, b1p, w2p = w1, b1, w2

    # ---- row tile: largest sublane multiple that fits the budget ------------
    prb = per_row_bytes(chunk)
    tile_fit = max(sublane, ((budget - fixed_bytes) // max(1, prb))
                   // sublane * sublane)
    tile_m = max(sublane, min(_round_up(min(int(tile_m), M), sublane), tile_fit))
    # v7x megacore: make sure the parallel (row) grid axis has >= 2 steps.
    if M > sublane and _cdiv(M, tile_m) < 2:
        tile_m = _round_up(_cdiv(M, 2), sublane)
    m_tiles = _cdiv(M, tile_m)        # ragged last tile; x never padded in HBM

    b1_2d = b1p.reshape(1, hid_p)
    b2_2d = b2.reshape(1, out_f)

    kernel = functools.partial(
        _mlp_kernel, chunk=chunk, n_inner=n_inner, k_steps=k_steps,
        activated_out=activated_out, residual=residual, mxu_dtype=mxu_dtype)

    if weights_resident:
        in_specs = [
            pl.BlockSpec((tile_m, in_f), lambda i, k: (i, 0)),              # x rows
            _spec((in_f, hid_p), lambda i, k: (0, 0), resident=True),       # W1
            _spec((1, hid_p), lambda i, k: (0, 0), resident=True),          # b1
            _spec((hid_p, out_f), lambda i, k: (0, 0), resident=True),      # W2
            _spec((1, out_f), lambda i, k: (0, 0), resident=True),          # b2
        ]
        weight_hbm_reads = resident_weight_bytes
    else:
        in_specs = [
            pl.BlockSpec((tile_m, in_f), lambda i, k: (i, 0)),              # x rows
            pl.BlockSpec((in_f, chunk), lambda i, k: (0, k)),               # W1 chunk
            pl.BlockSpec((1, chunk), lambda i, k: (0, k)),                  # b1 chunk
            pl.BlockSpec((chunk, out_f), lambda i, k: (k, 0)),              # W2 chunk
            _spec((1, out_f), lambda i, k: (0, 0), resident=True),          # b2
        ]
        weight_hbm_reads = (in_f * hid_p + hid_p * out_f) * wb * m_tiles

    vmem_limit = int(min(capacity,
                         max(32 * 1024 * 1024,
                             fixed_bytes + tile_m * prb + (8 << 20))))

    flops = 2 * M * (in_f * hid_p + hid_p * out_f)
    transcendentals = M * (hid_p + (out_f if activated_out else 0))
    bytes_accessed = int(M * (in_f + out_f) * xb + weight_hbm_reads)

    out2d = pl.pallas_call(
        kernel,
        out_shape=jax.ShapeDtypeStruct((M, out_f), x_dtype),
        grid_spec=pltpu.PrefetchScalarGridSpec(
            num_scalar_prefetch=0,
            grid=(m_tiles, k_steps),
            in_specs=in_specs,
            out_specs=pl.BlockSpec((tile_m, out_f), lambda i, k: (i, 0)),
            scratch_shapes=[pltpu.VMEM((tile_m, out_f), jnp.float32)],
        ),
        compiler_params=pltpu.CompilerParams(
            dimension_semantics=("parallel", "arbitrary"),
            vmem_limit_bytes=vmem_limit),
        cost_estimate=pl.CostEstimate(
            flops=flops,
            transcendentals=transcendentals,
            bytes_accessed=bytes_accessed),
    )(x2d, w1p, b1_2d, w2p, b2_2d)

    out = out2d.reshape(*lead_shape, out_f)
    if feature_dim == 1:
        out = jnp.transpose(out, (0, 2, 1))
    return out


def mlp_reference(x, w1, b1, w2, b2, *, activated_out, feature_dim, residual):
    """Pure-JAX reference matching the PyTorch module."""
    def gelu(v):
        return 0.5 * v * (1.0 + lax.erf(v / jnp.sqrt(2.0)))
    xin = jnp.transpose(x, (0, 2, 1)) if feature_dim == 1 else x
    h = gelu(xin.astype(jnp.float32) @ w1 + b1)
    y = h @ w2 + b2
    if activated_out:
        y = gelu(y)
    if feature_dim == 1:
        y = jnp.transpose(y, (0, 2, 1))
    if residual:
        y = y + x
    return y.astype(x.dtype)


if __name__ == "__main__":
    # Module config: MLP(in_features=32, out_features=32, activated_out=True,
    #                    feature_dim=-1, residual=True); hidden = max(32, 32) = 32
    in_features, out_features = 32, 32
    hidden = max(in_features, out_features)
    activated_out, feature_dim, residual = True, -1, True

    B, S = 2, 8
    key = jax.random.PRNGKey(0)
    kx, kw1, kb1, kw2, kb2 = jax.random.split(key, 5)

    x = jax.random.normal(kx, (B, S, in_features), dtype=jnp.float32)

    # Deterministic parameter init (Linear-style uniform bounds).
    bound1 = 1.0 / np.sqrt(in_features)
    bound2 = 1.0 / np.sqrt(hidden)
    # Stored pre-transposed: w1 is (in_features, hidden), w2 is (hidden, out_features)
    w1 = jax.random.uniform(kw1, (in_features, hidden), jnp.float32, -bound1, bound1)
    b1 = jax.random.uniform(kb1, (hidden,), jnp.float32, -bound1, bound1)
    w2 = jax.random.uniform(kw2, (hidden, out_features), jnp.float32, -bound2, bound2)
    b2 = jax.random.uniform(kb2, (out_features,), jnp.float32, -bound2, bound2)

    out = mlp_pallas(x, w1, b1, w2, b2, activated_out=activated_out,
                     feature_dim=feature_dim, residual=residual)
    out = jax.block_until_ready(out)

    ref = mlp_reference(x, w1, b1, w2, b2, activated_out=activated_out,
                        feature_dim=feature_dim, residual=residual)
    np.testing.assert_allclose(np.asarray(out), np.asarray(ref),
                               rtol=1e-5, atol=1e-5)
    print("KERNEL_OK")
</pallas_src>

<mosaic_0001>
module attributes {stable_mosaic.version = 11 : i64} {
  func.func @_mlp_kernel(%arg0: i32, %arg1: i32, %arg2: memref<8x32xf32, #tpu.memory_space<vmem>>, %arg3: memref<32x32xf32, #tpu.memory_space<vmem>>, %arg4: memref<1x32xf32, #tpu.memory_space<vmem>>, %arg5: memref<32x32xf32, #tpu.memory_space<vmem>>, %arg6: memref<1x32xf32, #tpu.memory_space<vmem>>, %arg7: memref<8x32xf32, #tpu.memory_space<vmem>>, %arg8: memref<8x32xf32, #tpu.memory_space<vmem>>) attributes {dimension_semantics = [#tpu.dimension_semantics<parallel>, #tpu.dimension_semantics<arbitrary>], iteration_bounds = array<i64: 2, 1>, scalar_prefetch = 0 : i64, scratch_operands = 1 : i64, tpu.core_type = #tpu.core_type<tc>, window_params = [{transform_indices = @transform_0, window_bounds = array<i64: 8, 32>}, {pipeline_mode = #tpu.pipeline_mode<synchronous>, transform_indices = @transform_1, window_bounds = array<i64: 32, 32>}, {pipeline_mode = #tpu.pipeline_mode<synchronous>, transform_indices = @transform_2, window_bounds = array<i64: 1, 32>}, {pipeline_mode = #tpu.pipeline_mode<synchronous>, transform_indices = @transform_3, window_bounds = array<i64: 32, 32>}, {pipeline_mode = #tpu.pipeline_mode<synchronous>, transform_indices = @transform_4, window_bounds = array<i64: 1, 32>}, {transform_indices = @transform_5, window_bounds = array<i64: 8, 32>}]} {
    %c0 = arith.constant 0 : index
    %c0_0 = arith.constant 0 : index
    %0 = vector.load %arg2[%c0, %c0_0] : memref<8x32xf32, #tpu.memory_space<vmem>>, vector<8x32xf32>
    %c0_1 = arith.constant 0 : index
    %c0_2 = arith.constant 0 : index
    %1 = vector.load %arg3[%c0_1, %c0_2] : memref<32x32xf32, #tpu.memory_space<vmem>>, vector<32x32xf32>
    %c0_3 = arith.constant 0 : index
    %c0_4 = arith.constant 0 : index
    %2 = vector.load %arg5[%c0_3, %c0_4] : memref<32x32xf32, #tpu.memory_space<vmem>>, vector<32x32xf32>
    %cst = arith.constant dense<0.000000e+00> : vector<8x32xf32>
    %3 = tpu.matmul %0, %1, %cst {dimension_numbers = #tpu.dot_dimension_numbers<[1], [0], [0], [1], [0, 0, 1, 1], [], []>} : vector<8x32xf32>, vector<32x32xf32>, vector<8x32xf32> -> vector<8x32xf32>
    %c0_5 = arith.constant 0 : index
    %c0_6 = arith.constant 0 : index
    %4 = vector.load %arg4[%c0_5, %c0_6] : memref<1x32xf32, #tpu.memory_space<vmem>>, vector<1x32xf32>
    %5 = vector.broadcast %4 : vector<1x32xf32> to vector<8x32xf32>
    %6 = arith.addf %3, %5 : vector<8x32xf32>
    %cst_7 = arith.constant 5.000000e-01 : f32
    %7 = vector.broadcast %cst_7 : f32 to vector<8x32xf32>
    %8 = arith.mulf %7, %6 : vector<8x32xf32>
    %cst_8 = arith.constant 0.707106769 : f32
    %9 = vector.broadcast %cst_8 : f32 to vector<8x32xf32>
    %10 = arith.mulf %6, %9 : vector<8x32xf32>
    %11 = math.erf %10 : vector<8x32xf32>
    %cst_9 = arith.constant 1.000000e+00 : f32
    %12 = vector.broadcast %cst_9 : f32 to vector<8x32xf32>
    %13 = arith.addf %12, %11 : vector<8x32xf32>
    %14 = arith.mulf %8, %13 : vector<8x32xf32>
    %cst_10 = arith.constant dense<0.000000e+00> : vector<8x32xf32>
    %15 = tpu.matmul %14, %2, %cst_10 {dimension_numbers = #tpu.dot_dimension_numbers<[1], [0], [0], [1], [0, 0, 1, 1], [], []>} : vector<8x32xf32>, vector<32x32xf32>, vector<8x32xf32> -> vector<8x32xf32>
    %c0_11 = arith.constant 0 : index
    %c0_12 = arith.constant 0 : index
    %16 = vector.load %arg6[%c0_11, %c0_12] : memref<1x32xf32, #tpu.memory_space<vmem>>, vector<1x32xf32>
    %17 = vector.broadcast %16 : vector<1x32xf32> to vector<8x32xf32>
    %18 = arith.addf %15, %17 : vector<8x32xf32>
    %cst_13 = arith.constant 5.000000e-01 : f32
    %19 = vector.broadcast %cst_13 : f32 to vector<8x32xf32>
    %20 = arith.mulf %19, %18 : vector<8x32xf32>
    %cst_14 = arith.constant 0.707106769 : f32
    %21 = vector.broadcast %cst_14 : f32 to vector<8x32xf32>
    %22 = arith.mulf %18, %21 : vector<8x32xf32>
    %23 = math.erf %22 : vector<8x32xf32>
    %cst_15 = arith.constant 1.000000e+00 : f32
    %24 = vector.broadcast %cst_15 : f32 to vector<8x32xf32>
    %25 = arith.addf %24, %23 : vector<8x32xf32>
    %26 = arith.mulf %20, %25 : vector<8x32xf32>
    %c0_16 = arith.constant 0 : index
    %c0_17 = arith.constant 0 : index
    %27 = vector.load %arg2[%c0_16, %c0_17] : memref<8x32xf32, #tpu.memory_space<vmem>>, vector<8x32xf32>
    %28 = arith.addf %26, %27 : vector<8x32xf32>
    %c0_18 = arith.constant 0 : index
    %c0_19 = arith.constant 0 : index
    %29 = vector.load %arg7[%c0_18, %c0_19] : memref<8x32xf32, #tpu.memory_space<vmem>>, vector<8x32xf32>
    tpu.vector_store %arg7[%c0_18, %c0_19], %28 {strides = array<i32>} : memref<8x32xf32, #tpu.memory_space<vmem>>, vector<8x32xf32>,
    return
  }
  func.func @transform_0(%arg0: i32, %arg1: i32) -> (i32, i32) {
    %c0_i32 = arith.constant 0 : i32
    %c0_i32_0 = arith.constant 0 : i32
    return %arg0, %c0_i32 : i32, i32
  }
  func.func @transform_1(%arg0: i32, %arg1: i32) -> (i32, i32) {
    %c0_i32 = arith.constant 0 : i32
    %c0_i32_0 = arith.constant 0 : i32
    %c0_i32_1 = arith.constant 0 : i32
    return %c0_i32, %c0_i32_0 : i32, i32
  }
  func.func @transform_2(%arg0: i32, %arg1: i32) -> (i32, i32) {
    %c0_i32 = arith.constant 0 : i32
    %c0_i32_0 = arith.constant 0 : i32
    %c0_i32_1 = arith.constant 0 : i32
    return %c0_i32, %c0_i32_0 : i32, i32
  }
  func.func @transform_3(%arg0: i32, %arg1: i32) -> (i32, i32) {
    %c0_i32 = arith.constant 0 : i32
    %c0_i32_0 = arith.constant 0 : i32
    %c0_i32_1 = arith.constant 0 : i32
    return %c0_i32, %c0_i32_0 : i32, i32
  }
  func.func @transform_4(%arg0: i32, %arg1: i32) -> (i32, i32) {
    %c0_i32 = arith.constant 0 : i32
    %c0_i32_0 = arith.constant 0 : i32
    %c0_i32_1 = arith.constant 0 : i32
    return %c0_i32, %c0_i32_0 : i32, i32
  }
  func.func @transform_5(%arg0: i32, %arg1: i32) -> (i32, i32) {
    %c0_i32 = arith.constant 0 : i32
    %c0_i32_0 = arith.constant 0 : i32
    return %arg0, %c0_i32 : i32, i32
  }
}

</mosaic_0001>

<llo_original>
// kernel: tpu_custom_call.1
$region0: #{tpu_custom_call.1}
  #allocation0 [shape = 'u32[]', space=smem, size = 0x4, offset = 0x4, fixed_abs, tag = 'smem constant byte address 0x4 - core index']
  #allocation1 [shape = 'u32[144,128]{1,0:T(1,128)}', space=vmem, size = 0x12000, scoped, tag = 'internal scratch']
  #allocation2 [shape = 'f32[8,32]{1,0:T(8,128)}', space=vmem, size = 0x1000, scoped, tag = 'scratch operand']
  %s0 = inlined_call_operand.hbm [shape: f32[16,32], index: 0, kind: input, shape index: {}]
  %s1 = inlined_call_operand.hbm [shape: f32[32,32], index: 1, kind: input, shape index: {}]
  %s2 = inlined_call_operand.vmem [shape: f32[1,32], index: 2, kind: input, shape index: {}]
  %s3 = inlined_call_operand.hbm [shape: f32[32,32], index: 3, kind: input, shape index: {}]
  %s4 = inlined_call_operand.vmem [shape: f32[1,32], index: 4, kind: input, shape index: {}]
  %s5 = inlined_call_operand.hbm [shape: f32[16,32], index: 5, kind: output, shape index: {}]
  %s6 = sld [smem:[#allocation0]]
  $region65: #{tpu_custom_call.1} parent=0
    _
  %s8 = ssub.s32 1, %s6
  %s9 = scalar_select 0, %s8, %s6
  $region1: #{tpu_custom_call.1} parent=0
    #allocation3 [shape = 'u8[8192]{0}', space=vmem, size = 0x2000, scoped, tag = 'input window, operand 0']
    #allocation4 [shape = 's32[2]{0}', space=sflag, size = 0x8, scoped, tag = 'scoped memory for tpu_custom_call.1']
    #allocation5 [shape = 's32[2]{0}', space=sflag, size = 0x8, scoped, tag = 'scoped memory for tpu_custom_call.1']
    #allocation6 [shape = 'u8[16384]{0}', space=vmem, size = 0x4000, scoped, tag = 'input window, operand 1, single buffered']
    #allocation7 [shape = 's32[1]{0}', space=sflag, size = 0x4, scoped, tag = 'scoped memory for tpu_custom_call.1']
    #allocation8 [shape = 'u8[16384]{0}', space=vmem, size = 0x4000, scoped, tag = 'input window, operand 3, single buffered']
    #allocation9 [shape = 'u8[8192]{0}', space=vmem, size = 0x2000, scoped, tag = 'output window, operand 0']
    %10 = vsyncpa [#allocation4], 0
    %s11 = scalar_lea.sflag [#allocation4], 1
    %12 = vsyncpa %s11, 0
    %13 = vsyncpa [#allocation7], 0
    %14 = vsyncpa [#allocation5], 0
    %s15 = scalar_lea.sflag [#allocation5], 1
    %16 = vsyncpa %s15, 0
    loop: start=0, step=1, limit=4
    $region2: #{tpu_custom_call.1} parent=1 // loop_pre_header
      _
    $region3: #{tpu_custom_call.1} parent=1 // loop_header
      %s18 = sphi 0, %s22
      %p19 = scmp.ge.s32.totalorder %s18, 4
      %s25 = sphi 0, %s37
      %s26 = sphi 0, %s33
      %s27 = sphi 0, %s25
      %s28 = sphi 0, %s26
      %s29 = sphi 0, %s27
      %s30 = sphi 0, %s28
      %s40 = sphi 0, %s42
      %s43 = sphi 0, %s40
      %s44 = sphi 0, %s43
      %s60 = sphi 0, %s44
      %s64 = sphi 0, %s64
      %s66 = sphi 0, %s64
      %s67 = sphi 0, %s66
      %s81 = sphi 0, %s67
      %s85 = sphi 0, %s85
      %s87 = sphi 0, %s85
      %s88 = sphi 0, %s87
      %s102 = sphi 0, %s88
      %s106 = sphi 0, %s106
      %s108 = sphi 0, %s106
      %s109 = sphi 0, %s108
      %s123 = sphi 0, %s109
      %s127 = sphi 0, %s127
      %s129 = sphi 0, %s127
      %s130 = sphi 0, %s129
      %s144 = sphi 0, %s130
      %s150 = sphi 0, %s152
      %s153 = sphi 0, %s150
      %s154 = sphi 0, %s153
      %s170 = sphi 0, %s154
    $region4: #{tpu_custom_call.1} parent=1 // loop_header_branch
      %21 = sbr.rel (%p19) target = $region8
    $region5: #{tpu_custom_call.1} parent=1 // loop_body
      %s23 = ssub.s32 %s18, 1
      %s24 = ssub.s32 %s18, 2
      %s31 = sadd.s32 1, %s26
      %p32 = scmp.ge.s32.totalorder %s31, 1
      %s33 = scalar_select %p32, 0, %s31
      %s34 = sadd.s32 1, %s25
      %s35 = scalar_select %p32, %s34, %s25
      %p36 = scmp.ge.s32.totalorder %s35, 2
      %s37 = scalar_select %p36, 0, %s35
      %s38 = ssub.s32 %s25, %s37
      %p39 = scmp.eq.s32.totalorder %s38, 0
      %s41 = sadd.s32 %s40, 1
      %s42 = scalar_select %p39, %s40, %s41
      %p45 = pneg %p39
      %p46 = scmp.eq.s32.totalorder %s18, 1
      %p47 = por %p45, %p46
      %p48 = scmp.ne.s32.totalorder %s40, %s43
      %p49 = scmp.eq.s32.totalorder %s18, 0
      %p50 = por %p48, %p49
      %p51 = scmp.ne.s32.totalorder %s40, %s43
      %p52 = scmp.eq.s32.totalorder %s23, 1
      %p53 = por %p51, %p52
      %p54 = scmp.ne.s32.totalorder %s43, %s44
      %p55 = scmp.eq.s32.totalorder %s23, 0
      %p56 = por %p54, %p55
      %p57 = scmp.ne.s32.totalorder %s43, %s44
      %p58 = scmp.eq.s32.totalorder %s24, 1
      %p59 = por %p57, %p58
      %p61 = scmp.ne.s32.totalorder %s44, %s60
      %p62 = scmp.eq.s32.totalorder %s24, 0
      %p63 = por %p61, %p62
      %s65 = sadd.s32 %s64, 1
      %p68 = scmp.eq.s32.totalorder %s18, 1
      %p69 = scmp.ne.s32.totalorder %s64, %s66
      %p70 = scmp.eq.s32.totalorder %s18, 0
      %p71 = por %p69, %p70
      %p72 = scmp.ne.s32.totalorder %s64, %s66
      %p73 = scmp.eq.s32.totalorder %s23, 1
      %p74 = por %p72, %p73
      %p75 = scmp.ne.s32.totalorder %s66, %s67
      %p76 = scmp.eq.s32.totalorder %s23, 0
      %p77 = por %p75, %p76
      %p78 = scmp.ne.s32.totalorder %s66, %s67
      %p79 = scmp.eq.s32.totalorder %s24, 1
      %p80 = por %p78, %p79
      %p82 = scmp.ne.s32.totalorder %s67, %s81
      %p83 = scmp.eq.s32.totalorder %s24, 0
      %p84 = por %p82, %p83
      %s86 = sadd.s32 %s85, 1
      %p89 = scmp.eq.s32.totalorder %s18, 1
      %p90 = scmp.ne.s32.totalorder %s85, %s87
      %p91 = scmp.eq.s32.totalorder %s18, 0
      %p92 = por %p90, %p91
      %p93 = scmp.ne.s32.totalorder %s85, %s87
      %p94 = scmp.eq.s32.totalorder %s23, 1
      %p95 = por %p93, %p94
      %p96 = scmp.ne.s32.totalorder %s87, %s88
      %p97 = scmp.eq.s32.totalorder %s23, 0
      %p98 = por %p96, %p97
      %p99 = scmp.ne.s32.totalorder %s87, %s88
      %p100 = scmp.eq.s32.totalorder %s24, 1
      %p101 = por %p99, %p100
      %p103 = scmp.ne.s32.totalorder %s88, %s102
      %p104 = scmp.eq.s32.totalorder %s24, 0
      %p105 = por %p103, %p104
      %s107 = sadd.s32 %s106, 1
      %p110 = scmp.eq.s32.totalorder %s18, 1
      %p111 = scmp.ne.s32.totalorder %s106, %s108
      %p112 = scmp.eq.s32.totalorder %s18, 0
      %p113 = por %p111, %p112
      %p114 = scmp.ne.s32.totalorder %s106, %s108
      %p115 = scmp.eq.s32.totalorder %s23, 1
      %p116 = por %p114, %p115
      %p117 = scmp.ne.s32.totalorder %s108, %s109
      %p118 = scmp.eq.s32.totalorder %s23, 0
      %p119 = por %p117, %p118
      %p120 = scmp.ne.s32.totalorder %s108, %s109
      %p121 = scmp.eq.s32.totalorder %s24, 1
      %p122 = por %p120, %p121
      %p124 = scmp.ne.s32.totalorder %s109, %s123
      %p125 = scmp.eq.s32.totalorder %s24, 0
      %p126 = por %p124, %p125
      %s128 = sadd.s32 %s127, 1
      %p131 = scmp.eq.s32.totalorder %s18, 1
      %p132 = scmp.ne.s32.totalorder %s127, %s129
      %p133 = scmp.eq.s32.totalorder %s18, 0
      %p134 = por %p132, %p133
      %p135 = scmp.ne.s32.totalorder %s127, %s129
      %p136 = scmp.eq.s32.totalorder %s23, 1
      %p137 = por %p135, %p136
      %p138 = scmp.ne.s32.totalorder %s129, %s130
      %p139 = scmp.eq.s32.totalorder %s23, 0
      %p140 = por %p138, %p139
      %p141 = scmp.ne.s32.totalorder %s129, %s130
      %p142 = scmp.eq.s32.totalorder %s24, 1
      %p143 = por %p141, %p142
      %p145 = scmp.ne.s32.totalorder %s130, %s144
      %p146 = scmp.eq.s32.totalorder %s24, 0
      %p147 = por %p145, %p146
      %s148 = ssub.s32 %s25, %s37
      %p149 = scmp.eq.s32.totalorder %s148, 0
      %s151 = sadd.s32 %s150, 1
      %s152 = scalar_select %p149, %s150, %s151
      %p155 = pneg %p149
      %p156 = scmp.eq.s32.totalorder %s18, 1
      %p157 = por %p155, %p156
      %p158 = scmp.ne.s32.totalorder %s150, %s153
      %p159 = scmp.eq.s32.totalorder %s18, 0
      %p160 = por %p158, %p159
      %p161 = scmp.ne.s32.totalorder %s150, %s153
      %p162 = scmp.eq.s32.totalorder %s23, 1
      %p163 = por %p161, %p162
      %p164 = scmp.ne.s32.totalorder %s153, %s154
      %p165 = scmp.eq.s32.totalorder %s23, 0
      %p166 = por %p164, %p165
      %p167 = scmp.ne.s32.totalorder %s153, %s154
      %p168 = scmp.eq.s32.totalorder %s24, 1
      %p169 = por %p167, %p168
      %p171 = scmp.ne.s32.totalorder %s154, %s170
      %p172 = scmp.eq.s32.totalorder %s24, 0
      %p173 = por %p171, %p172
      %p174 = scmp.le.s32.totalorder 1, %s18
      %p175 = scmp.lt.s32.totalorder %s18, 3
      %p176 = pnand %p174, %p175
      %p177 = pneg %p176
      // Predicated region
      $region9: #{tpu_custom_call.1} parent=5 // pred_check
        _
      $region10: #{tpu_custom_call.1} parent=5 // pred_check_branch
        %179 = sbr.rel (%p176) target = $region12
      $region11: #{tpu_custom_call.1} parent=5 // pred_region
        %s180 = ssub.s32 %s18, 1
        // Predicated region
        $region13: #{tpu_custom_call.1} parent=11 // pred_check
          %p181 = pneg %p77
        $region14: #{tpu_custom_call.1} parent=11 // pred_check_branch
          %183 = sbr.rel (%p181) target = $region16
        $region15: #{tpu_custom_call.1} parent=11 // pred_region
          %s185 = ssub.s32 512, 512
          %186 = vsyncadd [#allocation7], %s185
          %s187 = sshll.u32 [#allocation6], 4
          %s188 = int_to_ptr.vmem [resolvable:$true] %s187
          %193 = dma.hbm_to_vmem [thread:$0]  %s1, 512, %s188, [#allocation7], 128, 128, 8
        $region16: #{tpu_custom_call.1} parent=11 // pred_fallthru
          _
        // Predicated region
        $region17: #{tpu_custom_call.1} parent=11 // pred_check
          %p194 = pneg %p98
        $region18: #{tpu_custom_call.1} parent=11 // pred_check_branch
          %196 = sbr.rel (%p194) target = $region20
        $region19: #{tpu_custom_call.1} parent=11 // pred_region
          _
        $region20: #{tpu_custom_call.1} parent=11 // pred_fallthru
          _
        // Predicated region
        $region21: #{tpu_custom_call.1} parent=11 // pred_check
          %p197 = pneg %p119
        $region22: #{tpu_custom_call.1} parent=11 // pred_check_branch
          %199 = sbr.rel (%p197) target = $region24
        $region23: #{tpu_custom_call.1} parent=11 // pred_region
          %s201 = ssub.s32 512, 512
          %202 = vsyncadd [#allocation7], %s201
          %s203 = sshll.u32 [#allocation8], 4
          %s204 = int_to_ptr.vmem [resolvable:$true] %s203
          %209 = dma.hbm_to_vmem [thread:$0]  %s3, 512, %s204, [#allocation7], 128, 128, 8
        $region24: #{tpu_custom_call.1} parent=11 // pred_fallthru
          _
        // Predicated region
        $region25: #{tpu_custom_call.1} parent=11 // pred_check
          %p210 = pneg %p140
        $region26: #{tpu_custom_call.1} parent=11 // pred_check_branch
          %212 = sbr.rel (%p210) target = $region28
        $region27: #{tpu_custom_call.1} parent=11 // pred_region
          _
        $region28: #{tpu_custom_call.1} parent=11 // pred_fallthru
          _
      $region12: #{tpu_custom_call.1} parent=5 // pred_fallthru
        _
      %p213 = scmp.lt.s32.totalorder %s18, 2
      // Predicated region
      $region29: #{tpu_custom_call.1} parent=5 // pred_check
        %p214 = pneg %p213
      $region30: #{tpu_custom_call.1} parent=5 // pred_check_branch
        %216 = sbr.rel (%p214) target = $region32
      $region31: #{tpu_custom_call.1} parent=5 // pred_region
        // Predicated region
        $region33: #{tpu_custom_call.1} parent=31 // pred_check
          %p217 = pneg %p50
        $region34: #{tpu_custom_call.1} parent=31 // pred_check_branch
          %219 = sbr.rel (%p217) target = $region36
        $region35: #{tpu_custom_call.1} parent=31 // pred_region
          %s220 = sand.u32 %s40, 1
          %s221 = scalar_lea.sflag [#allocation4], %s220
          %s222 = sand.u32 %s40, 1
          %s223 = smul.addr %s222, 8
          %s224 = scalar_lea.vmem [#allocation3], %s223
          %s226 = ssub.s32 128, 128
          %227 = vsyncadd %s221, %s226
          %s228 = smul.addr %s25, 128
          %s229 = scalar_lea.hbm %s0, %s228
          %s231 = sshll.u32 %s224, 4
          %s232 = int_to_ptr.vmem [resolvable:$true] %s231
          %234 = dma.hbm_to_vmem [thread:$0]  %s229, 128, %s232, %s221
        $region36: #{tpu_custom_call.1} parent=31 // pred_fallthru
          _
      $region32: #{tpu_custom_call.1} parent=5 // pred_fallthru
        _
      %p235 = scmp.le.s32.totalorder 1, %s18
      %p236 = scmp.lt.s32.totalorder %s18, 3
      %p237 = pnand %p235, %p236
      %p238 = pneg %p237
      // Predicated region
      $region37: #{tpu_custom_call.1} parent=5 // pred_check
        _
      $region38: #{tpu_custom_call.1} parent=5 // pred_check_branch
        %240 = sbr.rel (%p237) target = $region40
      $region39: #{tpu_custom_call.1} parent=5 // pred_region
        %s241 = ssub.s32 %s18, 1
        %s242 = sand.u32 %s43, 1
        %s243 = scalar_lea.sflag [#allocation4], %s242
        %s244 = sand.u32 %s43, 1
        %s245 = smul.addr %s244, 8
        %s246 = scalar_lea.vmem [#allocation3], %s245
        // Predicated region
        $region41: #{tpu_custom_call.1} parent=39 // pred_check
          %p247 = pneg %p56
        $region42: #{tpu_custom_call.1} parent=39 // pred_check_branch
          %249 = sbr.rel (%p247) target = $region44
        $region43: #{tpu_custom_call.1} parent=39 // pred_region
          %250 = dma.done %s243, 128
        $region44: #{tpu_custom_call.1} parent=39 // pred_fallthru
          _
        // Predicated region
        $region45: #{tpu_custom_call.1} parent=39 // pred_check
          %p251 = pneg %p77
        $region46: #{tpu_custom_call.1} parent=39 // pred_check_branch
          %253 = sbr.rel (%p251) target = $region48
        $region47: #{tpu_custom_call.1} parent=39 // pred_region
          %254 = dma.done [#allocation7], 512
        $region48: #{tpu_custom_call.1} parent=39 // pred_fallthru
          _
        // Predicated region
        $region49: #{tpu_custom_call.1} parent=39 // pred_check
          %p255 = pneg %p119
        $region50: #{tpu_custom_call.1} parent=39 // pred_check_branch
          %257 = sbr.rel (%p255) target = $region52
        $region51: #{tpu_custom_call.1} parent=39 // pred_region
          %258 = dma.done [#allocation7], 512
        $region52: #{tpu_custom_call.1} parent=39 // pred_fallthru
          _
        %s259 = sand.u32 %s43, 1
        %s260 = scalar_lea.sflag [#allocation4], %s259
        %s261 = sand.u32 %s43, 1
        %s262 = smul.addr %s261, 8
        %s263 = scalar_lea.vmem [#allocation3], %s262
        %p264 = pneg %p56
        %p265 = pneg %p53
        %p266 = pneg %p77
        %p267 = pneg %p74
        %p268 = pneg %p98
        %p269 = pneg %p95
        %p270 = pneg %p119
        %p271 = pneg %p116
        %p272 = pneg %p140
        %p273 = pneg %p137
        %p274 = pneg %p166
        %p275 = pneg %p163
        %s276 = sand.u32 %s153, 1
        %s277 = scalar_lea.sflag [#allocation5], %s276
        %s278 = sand.u32 %s153, 1
        %s279 = smul.addr %s278, 8
        %s280 = scalar_lea.vmem [#allocation9], %s279
        %v281 = vld [vmem:[%s246] sm:$0xff]
        %v282 = vld [vmem:[#allocation6] sm:$0xff]
        %v283 = vld [vmem:[#allocation6 + $0x8] sm:$0xff]
        %v284 = vld [vmem:[#allocation6 + $0x10] sm:$0xff]
        %v285 = vld [vmem:[#allocation6 + $0x18] sm:$0xff]
        %v286 = vld [vmem:[#allocation8] sm:$0xff]
        %v287 = vld [vmem:[#allocation8 + $0x8] sm:$0xff]
        %v288 = vld [vmem:[#allocation8 + $0x10] sm:$0xff]
        %v289 = vld [vmem:[#allocation8 + $0x18] sm:$0xff]
        %v290 = vld [vmem:[%s2] sm:$0x1]
        %v292 = vlaneseq
        %v293 = vshrl.u32 %v292, 7
        %v294 = vsub.s32 0, %v293
        %v295 = vrot.slane %v290, %v294
        %vm297 = vcmask 261120
        %v299 = vsel %vm297, %v281, 0
        %301 = vmatprep.subr.mxu0 0.0
        %302 = vmatpush1.msra.mxu0 %v282
        %303 = vmatprep.subr.mxu0 0.0
        %304 = vmatpush1.msra.mxu0 %v283
        %305 = vmatprep.subr.mxu0 0.0
        %306 = vmatpush1.msra.mxu0 %v284
        %307 = vmatprep.subr.mxu0 0.0
        %308 = vmatpush1.msra.mxu0 %v285
        %309 = vmatprep.subr.mxu0 0.0
        %310 = vmatpush1.msra.mxu0 0.0
        %311 = vmatprep.subr.mxu0 0.0
        %312 = vmatpush1.msra.mxu0 0.0
        %313 = vmatprep.subr.mxu0 0.0
        %314 = vmatpush1.msra.mxu0 0.0
        %315 = vmatprep.subr.mxu0 0.0
        %316 = vmatpush1.msra.mxu0 0.0
        %317 = vmatprep.subr.mxu0 0.0
        %318 = vmatpush1.msra.mxu0 0.0
        %319 = vmatprep.subr.mxu0 0.0
        %320 = vmatpush1.msra.mxu0 0.0
        %321 = vmatprep.subr.mxu0 0.0
        %322 = vmatpush1.msra.mxu0 0.0
        %323 = vmatprep.subr.mxu0 0.0
        %324 = vmatpush1.msra.mxu0 0.0
        %325 = vmatprep.subr.mxu0 0.0
        %326 = vmatpush1.msra.mxu0 0.0
        %327 = vmatprep.subr.mxu0 0.0
        %328 = vmatpush1.msra.mxu0 0.0
        %329 = vmatprep.subr.mxu0 0.0
        %330 = vmatpush1.msra.mxu0 0.0
        %331 = vmatprep.subr.mxu0 0.0
        %332 = vmatpush1.msra.mxu0 0.0
        %333 = vmatprep.subr.mxu0 0.0
        %334 = vmatpush1.msra.mxu0 0.0
        %335 = vmatprep.subr.mxu0 0.0
        %336 = vmatpush1.msra.mxu0 0.0
        %337 = vmatprep.subr.mxu0 0.0
        %338 = vmatpush1.msra.mxu0 0.0
        %339 = vmatprep.subr.mxu0 0.0
        %340 = vmatpush1.msra.mxu0 0.0
        %341 = vmatprep.subr.mxu0 0.0
        %342 = vmatpush1.msra.mxu0 0.0
        %343 = vmatprep.subr.mxu0 0.0
        %344 = vmatpush1.msra.mxu0 0.0
        %345 = vmatprep.subr.mxu0 0.0
        %346 = vmatpush1.msra.mxu0 0.0
        %347 = vmatprep.subr.mxu0 0.0
        %348 = vmatpush1.msra.mxu0 0.0
        %349 = vmatprep.subr.mxu0 0.0
        %350 = vmatpush1.msra.mxu0 0.0
        %351 = vmatprep.subr.mxu0 0.0
        %352 = vmatpush1.msra.mxu0 0.0
        %353 = vmatprep.subr.mxu0 0.0
        %354 = vmatpush1.msra.mxu0 0.0
        %355 = vmatprep.subr.mxu0 0.0
        %356 = vmatpush1.msra.mxu0 0.0
        %357 = vmatprep.subr.mxu0 0.0
        %358 = vmatpush1.msra.mxu0 0.0
        %359 = vmatprep.subr.mxu0 0.0
        %360 = vmatpush1.msra.mxu0 0.0
        %361 = vmatprep.subr.mxu0 0.0
        %362 = vmatpush1.msra.mxu0 0.0
        %363 = vmatprep.subr.mxu0 0.0
        %364 = vmatpush1.msra.mxu0 0.0
        %365 = vmatprep.mubr.f32.mxu0 0.0
        %366 = vmatmul.mubr.f32.gmra.mrb[0].mxu0 %v299
        %v367 = vpop.f32.mrb[0].mxu0
        %v368 = vadd.f32 %v295, %v367
        %v369 = vpop.f32.mrb[0].mxu0
        %370 = vdwg.mxu0
        %v371 = vmul.f32 %v368, 0.5
        %v372 = vmul.f32 %v368, 0.70710677
        %v373 = verf.f32.pop %v372
        %v374 = vadd.f32 %v373, 1.0
        %v375 = vmul.f32 %v371, %v374
        %v376 = vld [vmem:[%s4] sm:$0x1]
        %v378 = vlaneseq
        %v379 = vshrl.u32 %v378, 7
        %v380 = vsub.s32 0, %v379
        %v381 = vrot.slane %v376, %v380
        %v384 = vsel %vm297, %v375, 0
        %386 = vmatprep.subr.mxu0 0.0
        %387 = vmatpush1.msra.mxu0 %v286
        %388 = vmatprep.subr.mxu0 0.0
        %389 = vmatpush1.msra.mxu0 %v287
        %390 = vmatprep.subr.mxu0 0.0
        %391 = vmatpush1.msra.mxu0 %v288
        %392 = vmatprep.subr.mxu0 0.0
        %393 = vmatpush1.msra.mxu0 %v289
        %394 = vmatprep.subr.mxu0 0.0
        %395 = vmatpush1.msra.mxu0 0.0
        %396 = vmatprep.subr.mxu0 0.0
        %397 = vmatpush1.msra.mxu0 0.0
        %398 = vmatprep.subr.mxu0 0.0
        %399 = vmatpush1.msra.mxu0 0.0
        %400 = vmatprep.subr.mxu0 0.0
        %401 = vmatpush1.msra.mxu0 0.0
        %402 = vmatprep.subr.mxu0 0.0
        %403 = vmatpush1.msra.mxu0 0.0
        %404 = vmatprep.subr.mxu0 0.0
        %405 = vmatpush1.msra.mxu0 0.0
        %406 = vmatprep.subr.mxu0 0.0
        %407 = vmatpush1.msra.mxu0 0.0
        %408 = vmatprep.subr.mxu0 0.0
        %409 = vmatpush1.msra.mxu0 0.0
        %410 = vmatprep.subr.mxu0 0.0
        %411 = vmatpush1.msra.mxu0 0.0
        %412 = vmatprep.subr.mxu0 0.0
        %413 = vmatpush1.msra.mxu0 0.0
        %414 = vmatprep.subr.mxu0 0.0
        %415 = vmatpush1.msra.mxu0 0.0
        %416 = vmatprep.subr.mxu0 0.0
        %417 = vmatpush1.msra.mxu0 0.0
        %418 = vmatprep.subr.mxu0 0.0
        %419 = vmatpush1.msra.mxu0 0.0
        %420 = vmatprep.subr.mxu0 0.0
        %421 = vmatpush1.msra.mxu0 0.0
        %422 = vmatprep.subr.mxu0 0.0
        %423 = vmatpush1.msra.mxu0 0.0
        %424 = vmatprep.subr.mxu0 0.0
        %425 = vmatpush1.msra.mxu0 0.0
        %426 = vmatprep.subr.mxu0 0.0
        %427 = vmatpush1.msra.mxu0 0.0
        %428 = vmatprep.subr.mxu0 0.0
        %429 = vmatpush1.msra.mxu0 0.0
        %430 = vmatprep.subr.mxu0 0.0
        %431 = vmatpush1.msra.mxu0 0.0
        %432 = vmatprep.subr.mxu0 0.0
        %433 = vmatpush1.msra.mxu0 0.0
        %434 = vmatprep.subr.mxu0 0.0
        %435 = vmatpush1.msra.mxu0 0.0
        %436 = vmatprep.subr.mxu0 0.0
        %437 = vmatpush1.msra.mxu0 0.0
        %438 = vmatprep.subr.mxu0 0.0
        %439 = vmatpush1.msra.mxu0 0.0
        %440 = vmatprep.subr.mxu0 0.0
        %441 = vmatpush1.msra.mxu0 0.0
        %442 = vmatprep.subr.mxu0 0.0
        %443 = vmatpush1.msra.mxu0 0.0
        %444 = vmatprep.subr.mxu0 0.0
        %445 = vmatpush1.msra.mxu0 0.0
        %446 = vmatprep.subr.mxu0 0.0
        %447 = vmatpush1.msra.mxu0 0.0
        %448 = vmatprep.subr.mxu0 0.0
        %449 = vmatpush1.msra.mxu0 0.0
        %450 = vmatprep.mubr.f32.mxu0 0.0
        %451 = vmatmul.mubr.f32.gmra.mrb[0].mxu0 %v384
        %v452 = vpop.f32.mrb[0].mxu0
        %v453 = vadd.f32 %v381, %v452
        %v454 = vpop.f32.mrb[0].mxu0
        %455 = vdwg.mxu0
        %v456 = vmul.f32 %v453, 0.5
        %v457 = vmul.f32 %v453, 0.70710677
        %v458 = verf.f32.pop %v457
        %v459 = vadd.f32 %v458, 1.0
        %v460 = vmul.f32 %v456, %v459
        %v461 = vadd.f32 %v460, %v281
        %462 = vst.msk [vmem:[%s280] sm:$0xff] %vm297, %v461
        %s463 = sand.u32 %s153, 1
        %s464 = scalar_lea.sflag [#allocation5], %s463
        %s465 = sand.u32 %s153, 1
        %s466 = smul.addr %s465, 8
        %s467 = scalar_lea.vmem [#allocation9], %s466
        // Predicated region
        $region53: #{tpu_custom_call.1} parent=39 // pred_check
          %p468 = pneg %p163
        $region54: #{tpu_custom_call.1} parent=39 // pred_check_branch
          %470 = sbr.rel (%p468) target = $region56
        $region55: #{tpu_custom_call.1} parent=39 // pred_region
          %s472 = ssub.s32 128, 128
          %473 = vsyncadd %s464, %s472
          %s474 = smul.addr %s27, 128
          %s475 = scalar_lea.hbm %s5, %s474
          %s477 = sshll.u32 %s467, 4
          %s478 = int_to_ptr.vmem [resolvable:$true] %s477
          %480 = dma.vmem_to_hbm [thread:$0]  %s478, 128, %s475, %s464
        $region56: #{tpu_custom_call.1} parent=39 // pred_fallthru
          _
      $region40: #{tpu_custom_call.1} parent=5 // pred_fallthru
        _
      %p481 = scmp.le.s32.totalorder 2, %s18
      // Predicated region
      $region57: #{tpu_custom_call.1} parent=5 // pred_check
        %p482 = pneg %p481
      $region58: #{tpu_custom_call.1} parent=5 // pred_check_branch
        %484 = sbr.rel (%p482) target = $region60
      $region59: #{tpu_custom_call.1} parent=5 // pred_region
        %s485 = ssub.s32 %s18, 2
        // Predicated region
        $region61: #{tpu_custom_call.1} parent=59 // pred_check
          %p486 = pneg %p169
        $region62: #{tpu_custom_call.1} parent=59 // pred_check_branch
          %488 = sbr.rel (%p486) target = $region64
        $region63: #{tpu_custom_call.1} parent=59 // pred_region
          %s489 = sand.u32 %s154, 1
          %s490 = scalar_lea.sflag [#allocation5], %s489
          %s491 = sand.u32 %s154, 1
          %s492 = smul.addr %s491, 8
          %s493 = scalar_lea.vmem [#allocation9], %s492
          %494 = dma.done %s490, 128
        $region64: #{tpu_custom_call.1} parent=59 // pred_fallthru
          _
      $region60: #{tpu_custom_call.1} parent=5 // pred_fallthru
        _
    $region6: #{tpu_custom_call.1} parent=1 // loop_footer
      %s22 = sadd.s32 1, %s18
    $region7: #{tpu_custom_call.1} parent=1 // loop_footer_branch
      %17 = sbr.rel target = $region3
    $region8: #{tpu_custom_call.1} parent=1 // loop_exit
      _
    %495 = vsyncpa [#allocation4], 1
    %s496 = scalar_lea.sflag [#allocation4], 1
    %497 = vsyncpa %s496, 1
    %498 = vsyncpa [#allocation7], 1
    %499 = vsyncpa [#allocation5], 1
    %s500 = scalar_lea.sflag [#allocation5], 1
    %501 = vsyncpa %s500, 1

</llo_original>
